<compile_context>
chip_gen: v5e
topology: v5e:2x2
jax: 0.10.0
libtpu: 0.0.40
codegen_flags: <defaults>
</compile_context>

<pallas_src>
import functools

import jax
import jax.numpy as jnp
from jax.experimental import pallas as pl
from jax.experimental.pallas import tpu as pltpu

LANE = 128
SUBLANE = 16        # bf16 sublane packing
MAX_BM = 1024       # batch-tile cap (VMEM stays well under limits at this size)


def _round_up(x, m):
    return ((x + m - 1) // m) * m


def _pick_tiles(batch):
    """Return (bm, b_pad): batch tile and padded batch (multiples of 16).

    Keeps >= 2 grid steps when the batch allows it (v7x megacore sharding)
    while using the largest tile that amortizes per-grid-step overhead.
    """
    b16 = _round_up(max(batch, 1), SUBLANE)
    if b16 <= 2 * SUBLANE:
        return b16, b16                      # tiny batch: one tile, minimal pad
    n_steps = max(2, -(-b16 // MAX_BM))      # at least 2 steps, tiles <= MAX_BM
    bm = _round_up(-(-b16 // n_steps), SUBLANE)
    b_pad = _round_up(b16, bm)
    return bm, b_pad


def _epilogue_dtype():
    """bf16 bias+ReLU epilogue on chips with bf16 VALUs (v6e/v7x), f32 otherwise."""
    try:
        kind = jax.devices()[0].device_kind.lower()
    except Exception:
        return jnp.float32
    if any(tag in kind for tag in ("v2", "v3", "v4", "v5")):
        return jnp.float32
    return jnp.bfloat16


def _make_mlp_kernel(epi_dtype):
    def mlp_kernel(x_ref,
                   w1_ref, b1_ref,
                   w2_ref, b2_ref,
                   w3_ref, b3_ref,
                   w4_ref, b4_ref,
                   o_ref):
        def linear_relu(h_bf16, w_ref, b_ref):
            # MXU: bf16 x bf16 -> f32 accumulate.
            acc = jnp.dot(h_bf16, w_ref[...], preferred_element_type=jnp.float32)
            # VPU epilogue (dropout == identity in eval mode).
            h = acc.astype(epi_dtype) + b_ref[...].astype(epi_dtype)
            return jnp.maximum(h, 0).astype(jnp.bfloat16)

        h = linear_relu(x_ref[...], w1_ref, b1_ref)   # (bm, 256)
        h = linear_relu(h, w2_ref, b2_ref)            # (bm, 256)
        h = linear_relu(h, w3_ref, b3_ref)            # (bm, 128)
        out = jnp.dot(h, w4_ref[...], preferred_element_type=jnp.float32)
        # Lane-dense (128-wide) bf16 store; sliced/cast to f32 in the wrapper.
        o_ref[...] = (out + b4_ref[...]).astype(o_ref.dtype)

    return mlp_kernel


@functools.partial(jax.jit, static_argnames=("n_act",))
def network_forward(x, params, *, n_act):
    """x: (B, n_obs) f32. params: prepared dict (pre-transposed bf16 weights,
    lane-padded output layer). Returns (B, n_act) f32 Q-values."""
    B, n_obs = x.shape
    w1, b1 = params["w1"], params["b1"]   # (n_obs,256) bf16, (1,256) f32
    w2, b2 = params["w2"], params["b2"]   # (256,256)   bf16, (1,256) f32
    w3, b3 = params["w3"], params["b3"]   # (256,128)   bf16, (1,128) f32
    w4, b4 = params["w4"], params["b4"]   # (128,128-padded) bf16, (1,128) f32
    n_act_pad = w4.shape[1]

    bm, b_pad = _pick_tiles(B)
    x_bf16 = x.astype(jnp.bfloat16)
    if b_pad != B:
        x_bf16 = jnp.pad(x_bf16, ((0, b_pad - B), (0, 0)))

    epi_dtype = _epilogue_dtype()

    flops = 2 * b_pad * (n_obs * 256 + 256 * 256 + 256 * 128 + 128 * n_act_pad)
    bytes_accessed = (x_bf16.size * 2 + b_pad * n_act_pad * 2
                      + (w1.size + w2.size + w3.size + w4.size) * 2
                      + (b1.size + b2.size + b3.size + b4.size) * 4)

    # Constant index_map -> weights/biases DMA'd into VMEM exactly once.
    full = lambda a: pl.BlockSpec(a.shape, lambda i: (0, 0))

    out_pad = pl.pallas_call(
        _make_mlp_kernel(epi_dtype),
        out_shape=jax.ShapeDtypeStruct((b_pad, n_act_pad), jnp.bfloat16),
        grid_spec=pltpu.PrefetchScalarGridSpec(
            num_scalar_prefetch=0,
            grid=(b_pad // bm,),
            in_specs=[
                pl.BlockSpec((bm, n_obs), lambda i: (i, 0)),   # x tile
                full(w1), full(b1),
                full(w2), full(b2),
                full(w3), full(b3),
                full(w4), full(b4),
            ],
            out_specs=pl.BlockSpec((bm, n_act_pad), lambda i: (i, 0)),
        ),
        compiler_params=pltpu.CompilerParams(
            dimension_semantics=("parallel",)),
        cost_estimate=pl.CostEstimate(
            flops=int(flops), transcendentals=0,
            bytes_accessed=int(bytes_accessed)),
    )(x_bf16, w1, b1, w2, b2, w3, b3, w4, b4)

    return out_pad[:B, :n_act].astype(jnp.float32)


def init_params(key, n_observations, n_actions):
    """Deterministic init mimicking nn.Linear's U(-1/sqrt(fan_in), 1/sqrt(fan_in)).
    Weights pre-transposed to (in,out) bf16; biases (1,out) f32.  The output
    layer is lane-padded to 128 columns once, here (not per forward call)."""
    dims = [(n_observations, 256), (256, 256), (256, 128), (128, n_actions)]
    params = {}
    keys = jax.random.split(key, 2 * len(dims))
    for idx, (fan_in, fan_out) in enumerate(dims):
        bound = 1.0 / (fan_in ** 0.5)
        w = jax.random.uniform(keys[2 * idx], (fan_in, fan_out),
                               minval=-bound, maxval=bound, dtype=jnp.float32)
        b = jax.random.uniform(keys[2 * idx + 1], (1, fan_out),
                               minval=-bound, maxval=bound, dtype=jnp.float32)
        params[f"w{idx + 1}"] = w.astype(jnp.bfloat16)
        params[f"b{idx + 1}"] = b
    n_act_pad = _round_up(n_actions, LANE)
    params["w4"] = (jnp.zeros((128, n_act_pad), jnp.bfloat16)
                    .at[:, :n_actions].set(params["w4"]))
    params["b4"] = (jnp.zeros((1, n_act_pad), jnp.float32)
                    .at[:, :n_actions].set(params["b4"]))
    return params


def reference_forward(x, params, *, n_act):
    """Pure-JAX reference mirroring the kernel's exact dtype path."""
    epi = _epilogue_dtype()
    bf16 = jnp.bfloat16

    def lr(h, w, b):
        acc = jnp.dot(h.astype(bf16), w, preferred_element_type=jnp.float32)
        h2 = acc.astype(epi) + b.astype(epi)
        return jnp.maximum(h2, 0).astype(bf16)

    h = lr(x, params["w1"], params["b1"])
    h = lr(h, params["w2"], params["b2"])
    h = lr(h, params["w3"], params["b3"])
    out = jnp.dot(h, params["w4"], preferred_element_type=jnp.float32) + params["b4"]
    return out.astype(bf16)[:, :n_act].astype(jnp.float32)


if __name__ == "__main__":
    n_observations = 32
    n_actions = 8

    key = jax.random.PRNGKey(0)
    k_params, k_x = jax.random.split(key)
    params = init_params(k_params, n_observations, n_actions)

    # batch=8 exercises the tiny-batch single-tile path; batch=40 exercises the
    # batch pad + multi-step grid (v7x megacore) path.
    for batch in (8, 40):
        kx = jax.random.fold_in(k_x, batch)
        x = jax.random.normal(kx, (batch, n_observations), dtype=jnp.float32)

        out = jax.block_until_ready(network_forward(x, params, n_act=n_actions))
        ref = reference_forward(x, params, n_act=n_actions)

        assert out.shape == (batch, n_actions)
        assert jnp.allclose(out, ref, atol=2e-2, rtol=2e-2), \
            f"mismatch vs JAX reference (batch={batch})"

    print("KERNEL_OK")
</pallas_src>

<mosaic_0001>
module attributes {stable_mosaic.version = 11 : i64} {
  func.func @mlp_kernel(%arg0: i32, %arg1: memref<16x32xbf16, #tpu.memory_space<vmem>>, %arg2: memref<32x256xbf16, #tpu.memory_space<vmem>>, %arg3: memref<1x256xf32, #tpu.memory_space<vmem>>, %arg4: memref<256x256xbf16, #tpu.memory_space<vmem>>, %arg5: memref<1x256xf32, #tpu.memory_space<vmem>>, %arg6: memref<256x128xbf16, #tpu.memory_space<vmem>>, %arg7: memref<1x128xf32, #tpu.memory_space<vmem>>, %arg8: memref<128x128xbf16, #tpu.memory_space<vmem>>, %arg9: memref<1x128xf32, #tpu.memory_space<vmem>>, %arg10: memref<16x128xbf16, #tpu.memory_space<vmem>>) attributes {dimension_semantics = [#tpu.dimension_semantics<parallel>], iteration_bounds = array<i64: 1>, scalar_prefetch = 0 : i64, scratch_operands = 0 : i64, tpu.core_type = #tpu.core_type<tc>, window_params = [{transform_indices = @transform_0, window_bounds = array<i64: 16, 32>}, {pipeline_mode = #tpu.pipeline_mode<synchronous>, transform_indices = @transform_1, window_bounds = array<i64: 32, 256>}, {pipeline_mode = #tpu.pipeline_mode<synchronous>, transform_indices = @transform_2, window_bounds = array<i64: 1, 256>}, {pipeline_mode = #tpu.pipeline_mode<synchronous>, transform_indices = @transform_3, window_bounds = array<i64: 256, 256>}, {pipeline_mode = #tpu.pipeline_mode<synchronous>, transform_indices = @transform_4, window_bounds = array<i64: 1, 256>}, {pipeline_mode = #tpu.pipeline_mode<synchronous>, transform_indices = @transform_5, window_bounds = array<i64: 256, 128>}, {pipeline_mode = #tpu.pipeline_mode<synchronous>, transform_indices = @transform_6, window_bounds = array<i64: 1, 128>}, {pipeline_mode = #tpu.pipeline_mode<synchronous>, transform_indices = @transform_7, window_bounds = array<i64: 128, 128>}, {pipeline_mode = #tpu.pipeline_mode<synchronous>, transform_indices = @transform_8, window_bounds = array<i64: 1, 128>}, {transform_indices = @transform_9, window_bounds = array<i64: 16, 128>}]} {
    %c0 = arith.constant 0 : index
    %c0_0 = arith.constant 0 : index
    %0 = vector.load %arg1[%c0, %c0_0] : memref<16x32xbf16, #tpu.memory_space<vmem>>, vector<16x32xbf16>
    %c0_1 = arith.constant 0 : index
    %c0_2 = arith.constant 0 : index
    %1 = vector.load %arg2[%c0_1, %c0_2] : memref<32x256xbf16, #tpu.memory_space<vmem>>, vector<32x256xbf16>
    %cst = arith.constant dense<0.000000e+00> : vector<16x256xf32>
    %2 = tpu.matmul %0, %1, %cst {dimension_numbers = #tpu.dot_dimension_numbers<[1], [0], [0], [1], [0, 0, 1, 1], [], []>} : vector<16x32xbf16>, vector<32x256xbf16>, vector<16x256xf32> -> vector<16x256xf32>
    %3 = arith.truncf %2 : vector<16x256xf32> to vector<16x256xbf16>
    %c0_3 = arith.constant 0 : index
    %c0_4 = arith.constant 0 : index
    %4 = vector.load %arg3[%c0_3, %c0_4] : memref<1x256xf32, #tpu.memory_space<vmem>>, vector<1x256xf32>
    %5 = arith.truncf %4 : vector<1x256xf32> to vector<1x256xbf16>
    %6 = vector.broadcast %5 : vector<1x256xbf16> to vector<16x256xbf16>
    %7 = arith.addf %3, %6 : vector<16x256xbf16>
    %cst_5 = arith.constant 0.000000e+00 : bf16
    %8 = vector.broadcast %cst_5 : bf16 to vector<16x256xbf16>
    %9 = arith.maximumf %7, %8 : vector<16x256xbf16>
    %c0_6 = arith.constant 0 : index
    %c0_7 = arith.constant 0 : index
    %10 = vector.load %arg4[%c0_6, %c0_7] : memref<256x256xbf16, #tpu.memory_space<vmem>>, vector<256x256xbf16>
    %cst_8 = arith.constant dense<0.000000e+00> : vector<16x256xf32>
    %11 = tpu.matmul %9, %10, %cst_8 {dimension_numbers = #tpu.dot_dimension_numbers<[1], [0], [0], [1], [0, 0, 1, 1], [], []>} : vector<16x256xbf16>, vector<256x256xbf16>, vector<16x256xf32> -> vector<16x256xf32>
    %12 = arith.truncf %11 : vector<16x256xf32> to vector<16x256xbf16>
    %c0_9 = arith.constant 0 : index
    %c0_10 = arith.constant 0 : index
    %13 = vector.load %arg5[%c0_9, %c0_10] : memref<1x256xf32, #tpu.memory_space<vmem>>, vector<1x256xf32>
    %14 = arith.truncf %13 : vector<1x256xf32> to vector<1x256xbf16>
    %15 = vector.broadcast %14 : vector<1x256xbf16> to vector<16x256xbf16>
    %16 = arith.addf %12, %15 : vector<16x256xbf16>
    %cst_11 = arith.constant 0.000000e+00 : bf16
    %17 = vector.broadcast %cst_11 : bf16 to vector<16x256xbf16>
    %18 = arith.maximumf %16, %17 : vector<16x256xbf16>
    %c0_12 = arith.constant 0 : index
    %c0_13 = arith.constant 0 : index
    %19 = vector.load %arg6[%c0_12, %c0_13] : memref<256x128xbf16, #tpu.memory_space<vmem>>, vector<256x128xbf16>
    %cst_14 = arith.constant dense<0.000000e+00> : vector<16x128xf32>
    %20 = tpu.matmul %18, %19, %cst_14 {dimension_numbers = #tpu.dot_dimension_numbers<[1], [0], [0], [1], [0, 0, 1, 1], [], []>} : vector<16x256xbf16>, vector<256x128xbf16>, vector<16x128xf32> -> vector<16x128xf32>
    %21 = arith.truncf %20 : vector<16x128xf32> to vector<16x128xbf16>
    %c0_15 = arith.constant 0 : index
    %c0_16 = arith.constant 0 : index
    %22 = vector.load %arg7[%c0_15, %c0_16] : memref<1x128xf32, #tpu.memory_space<vmem>>, vector<1x128xf32>
    %23 = arith.truncf %22 : vector<1x128xf32> to vector<1x128xbf16>
    %24 = vector.broadcast %23 : vector<1x128xbf16> to vector<16x128xbf16>
    %25 = arith.addf %21, %24 : vector<16x128xbf16>
    %cst_17 = arith.constant 0.000000e+00 : bf16
    %26 = vector.broadcast %cst_17 : bf16 to vector<16x128xbf16>
    %27 = arith.maximumf %25, %26 : vector<16x128xbf16>
    %c0_18 = arith.constant 0 : index
    %c0_19 = arith.constant 0 : index
    %28 = vector.load %arg8[%c0_18, %c0_19] : memref<128x128xbf16, #tpu.memory_space<vmem>>, vector<128x128xbf16>
    %cst_20 = arith.constant dense<0.000000e+00> : vector<16x128xf32>
    %29 = tpu.matmul %27, %28, %cst_20 {dimension_numbers = #tpu.dot_dimension_numbers<[1], [0], [0], [1], [0, 0, 1, 1], [], []>} : vector<16x128xbf16>, vector<128x128xbf16>, vector<16x128xf32> -> vector<16x128xf32>
    %c0_21 = arith.constant 0 : index
    %c0_22 = arith.constant 0 : index
    %30 = vector.load %arg9[%c0_21, %c0_22] : memref<1x128xf32, #tpu.memory_space<vmem>>, vector<1x128xf32>
    %31 = vector.broadcast %30 : vector<1x128xf32> to vector<16x128xf32>
    %32 = arith.addf %29, %31 : vector<16x128xf32>
    %33 = arith.truncf %32 : vector<16x128xf32> to vector<16x128xbf16>
    %c0_23 = arith.constant 0 : index
    %c0_24 = arith.constant 0 : index
    %34 = vector.load %arg10[%c0_23, %c0_24] : memref<16x128xbf16, #tpu.memory_space<vmem>>, vector<16x128xbf16>
    tpu.vector_store %arg10[%c0_23, %c0_24], %33 {strides = array<i32>} : memref<16x128xbf16, #tpu.memory_space<vmem>>, vector<16x128xbf16>,
    return
  }
  func.func @transform_0(%arg0: i32) -> (i32, i32) {
    %c0_i32 = arith.constant 0 : i32
    %c0_i32_0 = arith.constant 0 : i32
    return %arg0, %c0_i32 : i32, i32
  }
  func.func @transform_1(%arg0: i32) -> (i32, i32) {
    %c0_i32 = arith.constant 0 : i32
    %c0_i32_0 = arith.constant 0 : i32
    %c0_i32_1 = arith.constant 0 : i32
    return %c0_i32, %c0_i32_0 : i32, i32
  }
  func.func @transform_2(%arg0: i32) -> (i32, i32) {
    %c0_i32 = arith.constant 0 : i32
    %c0_i32_0 = arith.constant 0 : i32
    %c0_i32_1 = arith.constant 0 : i32
    return %c0_i32, %c0_i32_0 : i32, i32
  }
  func.func @transform_3(%arg0: i32) -> (i32, i32) {
    %c0_i32 = arith.constant 0 : i32
    %c0_i32_0 = arith.constant 0 : i32
    %c0_i32_1 = arith.constant 0 : i32
    return %c0_i32, %c0_i32_0 : i32, i32
  }
  func.func @transform_4(%arg0: i32) -> (i32, i32) {
    %c0_i32 = arith.constant 0 : i32
    %c0_i32_0 = arith.constant 0 : i32
    %c0_i32_1 = arith.constant 0 : i32
    return %c0_i32, %c0_i32_0 : i32, i32
  }
  func.func @transform_5(%arg0: i32) -> (i32, i32) {
    %c0_i32 = arith.constant 0 : i32
    %c0_i32_0 = arith.constant 0 : i32
    %c0_i32_1 = arith.constant 0 : i32
    return %c0_i32, %c0_i32_0 : i32, i32
  }
  func.func @transform_6(%arg0: i32) -> (i32, i32) {
    %c0_i32 = arith.constant 0 : i32
    %c0_i32_0 = arith.constant 0 : i32
    %c0_i32_1 = arith.constant 0 : i32
    return %c0_i32, %c0_i32_0 : i32, i32
  }
  func.func @transform_7(%arg0: i32) -> (i32, i32) {
    %c0_i32 = arith.constant 0 : i32
    %c0_i32_0 = arith.constant 0 : i32
    %c0_i32_1 = arith.constant 0 : i32
    return %c0_i32, %c0_i32_0 : i32, i32
  }
  func.func @transform_8(%arg0: i32) -> (i32, i32) {
    %c0_i32 = arith.constant 0 : i32
    %c0_i32_0 = arith.constant 0 : i32
    %c0_i32_1 = arith.constant 0 : i32
    return %c0_i32, %c0_i32_0 : i32, i32
  }
  func.func @transform_9(%arg0: i32) -> (i32, i32) {
    %c0_i32 = arith.constant 0 : i32
    %c0_i32_0 = arith.constant 0 : i32
    return %arg0, %c0_i32 : i32, i32
  }
}

</mosaic_0001>

<llo_original>
// kernel: network_forward.1
$region0: #{network_forward.1}
  #allocation0 [shape = 'u32[]', space=smem, size = 0x4, offset = 0x4, fixed_abs, tag = 'smem constant byte address 0x4 - core index']
  #allocation1 [shape = 'u32[72,128]{1,0:T(1,128)}', space=vmem, size = 0x9000, scoped, tag = 'internal scratch']
  %s0 = inlined_call_operand.vmem [shape: bf16[16,32], index: 0, kind: input, shape index: {}]
  %s1 = inlined_call_operand.hbm [shape: bf16[32,256], index: 1, kind: input, shape index: {}]
  %s2 = inlined_call_operand.vmem [shape: f32[1,256], index: 2, kind: input, shape index: {}]
  %s3 = inlined_call_operand.hbm [shape: bf16[256,256], index: 3, kind: input, shape index: {}]
  %s4 = inlined_call_operand.vmem [shape: f32[1,256], index: 4, kind: input, shape index: {}]
  %s5 = inlined_call_operand.hbm [shape: bf16[256,128], index: 5, kind: input, shape index: {}]
  %s6 = inlined_call_operand.vmem [shape: f32[1,128], index: 6, kind: input, shape index: {}]
  %s7 = inlined_call_operand.hbm [shape: bf16[128,128], index: 7, kind: input, shape index: {}]
  %s8 = inlined_call_operand.vmem [shape: f32[1,128], index: 8, kind: input, shape index: {}]
  %s9 = inlined_call_operand.vmem [shape: bf16[16,128], index: 9, kind: output, shape index: {}]
  %s10 = sld [smem:[#allocation0]]
  $region62: #{network_forward.1} parent=0
    _
  %s12 = ssub.s32 1, %s10
  %s13 = scalar_select 0, %s12, %s10
  $region1: #{network_forward.1} parent=0
    #allocation2 [shape = 'u8[16384]{0}', space=vmem, size = 0x4000, scoped, tag = 'input window, operand 1, single buffered']
    #allocation3 [shape = 's32[1]{0}', space=sflag, size = 0x4, scoped, tag = 'scoped memory for network_forward.1']
    #allocation4 [shape = 'u8[131072]{0}', space=vmem, size = 0x20000, scoped, tag = 'input window, operand 3, single buffered']
    #allocation5 [shape = 's32[1]{0}', space=sflag, size = 0x4, scoped, tag = 'scoped memory for network_forward.1']
    #allocation6 [shape = 'u8[65536]{0}', space=vmem, size = 0x10000, scoped, tag = 'input window, operand 5, single buffered']
    #allocation7 [shape = 'u8[32768]{0}', space=vmem, size = 0x8000, scoped, tag = 'input window, operand 7, single buffered']
    #allocation8 [shape = 's32[1]{0}', space=sflag, size = 0x4, scoped, tag = 'scoped memory for network_forward.1']
    %14 = vsyncpa [#allocation3], 0
    %15 = vsyncpa [#allocation5], 0
    %16 = vsyncpa [#allocation8], 0
    // Predicated region
    $region2: #{network_forward.1} parent=1 // pred_check
      _
    $region3: #{network_forward.1} parent=1 // pred_check_branch
      %18 = sbr.rel (0) target = $region5
    $region4: #{network_forward.1} parent=1 // pred_region
      _
    $region5: #{network_forward.1} parent=1 // pred_fallthru
      _
    // Predicated region
    $region6: #{network_forward.1} parent=1 // pred_check
      _
    $region7: #{network_forward.1} parent=1 // pred_check_branch
      %20 = sbr.rel (0) target = $region9
    $region8: #{network_forward.1} parent=1 // pred_region
      %22 = vsyncadd [#allocation3], 0
      %s23 = sshll.u32 %s1, 4
      %s24 = int_to_ptr.hbm [resolvable:$true] %s23
      %s25 = sshll.u32 [#allocation2], 4
      %s26 = int_to_ptr.vmem [resolvable:$true] %s25
      %31 = dma.hbm_to_vmem [thread:$0]  %s24, 512, %s26, [#allocation3], 128, 128, 8
    $region9: #{network_forward.1} parent=1 // pred_fallthru
      _
    // Predicated region
    $region10: #{network_forward.1} parent=1 // pred_check
      _
    $region11: #{network_forward.1} parent=1 // pred_check_branch
      %33 = sbr.rel (0) target = $region13
    $region12: #{network_forward.1} parent=1 // pred_region
      _
    $region13: #{network_forward.1} parent=1 // pred_fallthru
      _
    // Predicated region
    $region14: #{network_forward.1} parent=1 // pred_check
      _
    $region15: #{network_forward.1} parent=1 // pred_check_branch
      %35 = sbr.rel (0) target = $region17
    $region16: #{network_forward.1} parent=1 // pred_region
      %37 = vsyncadd [#allocation5], 0
      %s38 = sshll.u32 %s3, 4
      %s39 = int_to_ptr.hbm [resolvable:$true] %s38
      %s40 = sshll.u32 [#allocation4], 4
      %s41 = int_to_ptr.vmem [resolvable:$true] %s40
      %46 = dma.hbm_to_vmem [thread:$0]  %s39, 4096, %s41, [#allocation5], 128, 128, 8
    $region17: #{network_forward.1} parent=1 // pred_fallthru
      _
    // Predicated region
    $region18: #{network_forward.1} parent=1 // pred_check
      _
    $region19: #{network_forward.1} parent=1 // pred_check_branch
      %48 = sbr.rel (0) target = $region21
    $region20: #{network_forward.1} parent=1 // pred_region
      _
    $region21: #{network_forward.1} parent=1 // pred_fallthru
      _
    // Predicated region
    $region22: #{network_forward.1} parent=1 // pred_check
      _
    $region23: #{network_forward.1} parent=1 // pred_check_branch
      %50 = sbr.rel (0) target = $region25
    $region24: #{network_forward.1} parent=1 // pred_region
      %52 = vsyncadd [#allocation5], 0
      %s53 = sshll.u32 %s5, 4
      %s54 = int_to_ptr.hbm [resolvable:$true] %s53
      %s55 = sshll.u32 [#allocation6], 4
      %s56 = int_to_ptr.vmem [resolvable:$true] %s55
      %61 = dma.hbm_to_vmem [thread:$0]  %s54, 2048, %s56, [#allocation5], 64, 64, 4
    $region25: #{network_forward.1} parent=1 // pred_fallthru
      _
    // Predicated region
    $region26: #{network_forward.1} parent=1 // pred_check
      _
    $region27: #{network_forward.1} parent=1 // pred_check_branch
      %63 = sbr.rel (0) target = $region29
    $region28: #{network_forward.1} parent=1 // pred_region
      _
    $region29: #{network_forward.1} parent=1 // pred_fallthru
      _
    // Predicated region
    $region30: #{network_forward.1} parent=1 // pred_check
      _
    $region31: #{network_forward.1} parent=1 // pred_check_branch
      %65 = sbr.rel (0) target = $region33
    $region32: #{network_forward.1} parent=1 // pred_region
      %67 = vsyncadd [#allocation8], 0
      %s68 = sshll.u32 %s7, 4
      %s69 = int_to_ptr.hbm [resolvable:$true] %s68
      %s70 = sshll.u32 [#allocation7], 4
      %s71 = int_to_ptr.vmem [resolvable:$true] %s70
      %76 = dma.hbm_to_vmem [thread:$0]  %s69, 1024, %s71, [#allocation8], 64, 64, 4
    $region33: #{network_forward.1} parent=1 // pred_fallthru
      _
    // Predicated region
    $region34: #{network_forward.1} parent=1 // pred_check
      _
    $region35: #{network_forward.1} parent=1 // pred_check_branch
      %78 = sbr.rel (0) target = $region37
    $region36: #{network_forward.1} parent=1 // pred_region
      _
    $region37: #{network_forward.1} parent=1 // pred_fallthru
      _
    // Predicated region
    $region38: #{network_forward.1} parent=1 // pred_check
      _
    $region39: #{network_forward.1} parent=1 // pred_check_branch
      %80 = sbr.rel (0) target = $region41
    $region40: #{network_forward.1} parent=1 // pred_region
      %82 = dma.done [#allocation3], 512
    $region41: #{network_forward.1} parent=1 // pred_fallthru
      _
    // Predicated region
    $region42: #{network_forward.1} parent=1 // pred_check
      _
    $region43: #{network_forward.1} parent=1 // pred_check_branch
      %84 = sbr.rel (0) target = $region45
    $region44: #{network_forward.1} parent=1 // pred_region
      %86 = dma.done [#allocation5], 4096
    $region45: #{network_forward.1} parent=1 // pred_fallthru
      _
    // Predicated region
    $region46: #{network_forward.1} parent=1 // pred_check
      _
    $region47: #{network_forward.1} parent=1 // pred_check_branch
      %88 = sbr.rel (0) target = $region49
    $region48: #{network_forward.1} parent=1 // pred_region
      %90 = dma.done [#allocation5], 2048
    $region49: #{network_forward.1} parent=1 // pred_fallthru
      _
    // Predicated region
    $region50: #{network_forward.1} parent=1 // pred_check
      _
    $region51: #{network_forward.1} parent=1 // pred_check_branch
      %92 = sbr.rel (0) target = $region53
    $region52: #{network_forward.1} parent=1 // pred_region
      %94 = dma.done [#allocation8], 1024
    $region53: #{network_forward.1} parent=1 // pred_fallthru
      _
    %v96 = vld [vmem:[%s0] sm:$0xf]
    %v97 = vld [vmem:[%s0 + $0x4] sm:$0xf]
    %v98 = vld [vmem:[#allocation2] sm:$0xff]
    %v99 = vld [vmem:[#allocation2 + $0x8] sm:$0xff]
    %v100 = vld [vmem:[#allocation2 + $0x10] sm:$0xff]
    %v101 = vld [vmem:[#allocation2 + $0x18] sm:$0xff]
    %v104 = vunpack.c.l.b16 %v96
    %v105 = vunpack.c.l.b16 %v97
    %v106 = vpack.c.b16 %v105, %v104
    %v111 = vunpack.c.l.b16 %v98
    %v112 = vunpack.c.h.b16 %v98
    %v113 = vunpack.c.l.b16 %v99
    %v114 = vunpack.c.h.b16 %v99
    %v115 = vunpack.c.l.b16 %v100
    %v116 = vunpack.c.h.b16 %v100
    %v117 = vunpack.c.l.b16 %v101
    %v118 = vunpack.c.h.b16 %v101
    %v119 = vpack.c.b16 %v113, %v111
    %v120 = vpack.c.b16 %v114, %v112
    %v121 = vpack.c.b16 %v117, %v115
    %v122 = vpack.c.b16 %v118, %v116
    %vm127 = vcmask 261120
    %v129 = vsel %vm127, %v106, 0
    %131 = vmatpush.bf16.msra.mxu0 0
    %132 = vmatpush.bf16.msra.mxu0 0
    %133 = vmatpush.bf16.msra.mxu0 0
    %134 = vmatpush.bf16.msra.mxu0 0
    %135 = vmatpush.bf16.msra.mxu0 0
    %136 = vmatpush.bf16.msra.mxu0 0
    %137 = vmatpush.bf16.msra.mxu0 %v121
    %138 = vmatpush.bf16.msra.mxu0 %v119
    %139 = vmatmul.bf16.gmra.mxu0 %v129
    %v140 = vpop.f32.mrf.mxu0
    %v141 = vadd.f32 0.0, %v140
    %v142 = vpop.f32.mrf.mxu0
    %v143 = vadd.f32 0.0, %v142
    %144 = vdwg.mxu0
    %145 = vmatpush.bf16.msra.mxu0 0
    %146 = vmatpush.bf16.msra.mxu0 0
    %147 = vmatpush.bf16.msra.mxu0 0
    %148 = vmatpush.bf16.msra.mxu0 0
    %149 = vmatpush.bf16.msra.mxu0 0
    %150 = vmatpush.bf16.msra.mxu0 0
    %151 = vmatpush.bf16.msra.mxu0 %v122
    %152 = vmatpush.bf16.msra.mxu0 %v120
    %153 = vmatmul.bf16.gmra.mxu0 %v129
    %v154 = vpop.f32.mrf.mxu0
    %v155 = vadd.f32 0.0, %v154
    %v156 = vpop.f32.mrf.mxu0
    %v157 = vadd.f32 0.0, %v156
    %158 = vdwg.mxu0
    %v159 = vpack.c.bf16 %v155, %v141
    %v160 = vpack.c.bf16 %v157, %v143
    %v161 = vld [vmem:[%s2] sm:$0x3]
    %v163 = vperm.slane %v161, 0
    %v164 = vperm.slane %v161, 1
    %v167 = vpack.c.bf16 %v164, %v163
    %v169 = vunpack.c.l.b16 %v167
    %v170 = vunpack.c.h.b16 %v167
    %v171 = vpack.c.b16 %v169, %v169
    %v172 = vpack.c.b16 %v170, %v170
    %v174 = vpack.i.b16 %v171, %v171
    %v176 = vperm.slane %v174, 0
    %v178 = vpack.i.b16 %v172, %v172
    %v180 = vperm.slane %v178, 0
    %v181 = vunpack.c.l.bf16 %v159
    %v182 = vunpack.c.h.bf16 %v159
    %v183 = vunpack.c.l.bf16 %v160
    %v184 = vunpack.c.h.bf16 %v160
    %v185 = vunpack.c.l.bf16 %v176
    %v186 = vunpack.c.l.bf16 %v180
    %v187 = vadd.f32 %v181, %v185
    %v188 = vadd.f32 %v182, %v186
    %v189 = vadd.f32 %v183, %v185
    %v190 = vadd.f32 %v184, %v186
    %v191 = vpack.c.bf16 %v188, %v187
    %v192 = vpack.c.bf16 %v190, %v189
    %v193 = vunpack.c.l.bf16 %v191
    %v194 = vunpack.c.h.bf16 %v191
    %v195 = vunpack.c.l.bf16 %v192
    %v196 = vunpack.c.h.bf16 %v192
    %v197 = vmax.f32 %v193, 0.0
    %v198 = vmax.f32 %v194, 0.0
    %v199 = vmax.f32 %v195, 0.0
    %v200 = vmax.f32 %v196, 0.0
    %v201 = vpack.c.bf16 %v199, %v197
    %v202 = vpack.c.bf16 %v200, %v198
    %v203 = vld [vmem:[#allocation4] sm:$0xff]
    %v204 = vld [vmem:[#allocation4 + $0x8] sm:$0xff]
    %v205 = vld [vmem:[#allocation4 + $0x10] sm:$0xff]
    %v206 = vld [vmem:[#allocation4 + $0x18] sm:$0xff]
    %v207 = vld [vmem:[#allocation4 + $0x20] sm:$0xff]
    %v208 = vld [vmem:[#allocation4 + $0x28] sm:$0xff]
    %v209 = vld [vmem:[#allocation4 + $0x30] sm:$0xff]
    %v210 = vld [vmem:[#allocation4 + $0x38] sm:$0xff]
    %v211 = vld [vmem:[#allocation4 + $0x40] sm:$0xff]
    %v212 = vld [vmem:[#allocation4 + $0x48] sm:$0xff]
    %v213 = vld [vmem:[#allocation4 + $0x50] sm:$0xff]
    %v214 = vld [vmem:[#allocation4 + $0x58] sm:$0xff]
    %v215 = vld [vmem:[#allocation4 + $0x60] sm:$0xff]
    %v216 = vld [vmem:[#allocation4 + $0x68] sm:$0xff]
    %v217 = vld [vmem:[#allocation4 + $0x70] sm:$0xff]
    %v218 = vld [vmem:[#allocation4 + $0x78] sm:$0xff]
    %v219 = vld [vmem:[#allocation4 + $0x80] sm:$0xff]
    %v220 = vld [vmem:[#allocation4 + $0x88] sm:$0xff]
    %v221 = vld [vmem:[#allocation4 + $0x90] sm:$0xff]
    %v222 = vld [vmem:[#allocation4 + $0x98] sm:$0xff]
    %v223 = vld [vmem:[#allocation4 + $0xa0] sm:$0xff]
    %v224 = vld [vmem:[#allocation4 + $0xa8] sm:$0xff]
    %v225 = vld [vmem:[#allocation4 + $0xb0] sm:$0xff]
    %v226 = vld [vmem:[#allocation4 + $0xb8] sm:$0xff]
    %v227 = vld [vmem:[#allocation4 + $0xc0] sm:$0xff]
    %v228 = vld [vmem:[#allocation4 + $0xc8] sm:$0xff]
    %v229 = vld [vmem:[#allocation4 + $0xd0] sm:$0xff]
    %v230 = vld [vmem:[#allocation4 + $0xd8] sm:$0xff]
    %v231 = vld [vmem:[#allocation4 + $0xe0] sm:$0xff]
    %v232 = vld [vmem:[#allocation4 + $0xe8] sm:$0xff]
    %v233 = vld [vmem:[#allocation4 + $0xf0] sm:$0xff]
    %v234 = vld [vmem:[#allocation4 + $0xf8] sm:$0xff]
    %v267 = vunpack.c.l.b16 %v203
    %v268 = vunpack.c.h.b16 %v203
    %v269 = vunpack.c.l.b16 %v204
    %v270 = vunpack.c.h.b16 %v204
    %v271 = vunpack.c.l.b16 %v205
    %v272 = vunpack.c.h.b16 %v205
    %v273 = vunpack.c.l.b16 %v206
    %v274 = vunpack.c.h.b16 %v206
    %v275 = vunpack.c.l.b16 %v207
    %v276 = vunpack.c.h.b16 %v207
    %v277 = vunpack.c.l.b16 %v208
    %v278 = vunpack.c.h.b16 %v208
    %v279 = vunpack.c.l.b16 %v209
    %v280 = vunpack.c.h.b16 %v209
    %v281 = vunpack.c.l.b16 %v210
    %v282 = vunpack.c.h.b16 %v210
    %v283 = vunpack.c.l.b16 %v211
    %v284 = vunpack.c.h.b16 %v211
    %v285 = vunpack.c.l.b16 %v212
    %v286 = vunpack.c.h.b16 %v212
    %v287 = vunpack.c.l.b16 %v213
    %v288 = vunpack.c.h.b16 %v213
    %v289 = vunpack.c.l.b16 %v214
    %v290 = vunpack.c.h.b16 %v214
    %v291 = vunpack.c.l.b16 %v215
    %v292 = vunpack.c.h.b16 %v215
    %v293 = vunpack.c.l.b16 %v216
    %v294 = vunpack.c.h.b16 %v216
    %v295 = vunpack.c.l.b16 %v217
    %v296 = vunpack.c.h.b16 %v217
    %v297 = vunpack.c.l.b16 %v218
    %v298 = vunpack.c.h.b16 %v218
    %v299 = vunpack.c.l.b16 %v219
    %v300 = vunpack.c.h.b16 %v219
    %v301 = vunpack.c.l.b16 %v220
    %v302 = vunpack.c.h.b16 %v220
    %v303 = vunpack.c.l.b16 %v221
    %v304 = vunpack.c.h.b16 %v221
    %v305 = vunpack.c.l.b16 %v222
    %v306 = vunpack.c.h.b16 %v222
    %v307 = vunpack.c.l.b16 %v223
    %v308 = vunpack.c.h.b16 %v223
    %v309 = vunpack.c.l.b16 %v224
    %v310 = vunpack.c.h.b16 %v224
    %v311 = vunpack.c.l.b16 %v225
    %v312 = vunpack.c.h.b16 %v225
    %v313 = vunpack.c.l.b16 %v226
    %v314 = vunpack.c.h.b16 %v226
    %v315 = vunpack.c.l.b16 %v227
    %v316 = vunpack.c.h.b16 %v227
    %v317 = vunpack.c.l.b16 %v228
    %v318 = vunpack.c.h.b16 %v228
    %v319 = vunpack.c.l.b16 %v229
    %v320 = vunpack.c.h.b16 %v229
    %v321 = vunpack.c.l.b16 %v230
    %v322 = vunpack.c.h.b16 %v230
    %v323 = vunpack.c.l.b16 %v231
    %v324 = vunpack.c.h.b16 %v231
    %v325 = vunpack.c.l.b16 %v232
    %v326 = vunpack.c.h.b16 %v232
    %v327 = vunpack.c.l.b16 %v233
    %v328 = vunpack.c.h.b16 %v233
    %v329 = vunpack.c.l.b16 %v234
    %v330 = vunpack.c.h.b16 %v234
    %v331 = vpack.c.b16 %v269, %v267
    %v332 = vpack.c.b16 %v270, %v268
    %v333 = vpack.c.b16 %v273, %v271
    %v334 = vpack.c.b16 %v274, %v272
    %v335 = vpack.c.b16 %v277, %v275
    %v336 = vpack.c.b16 %v278, %v276
    %v337 = vpack.c.b16 %v281, %v279
    %v338 = vpack.c.b16 %v282, %v280
    %v339 = vpack.c.b16 %v285, %v283
    %v340 = vpack.c.b16 %v286, %v284
    %v341 = vpack.c.b16 %v289, %v287
    %v342 = vpack.c.b16 %v290, %v288
    %v343 = vpack.c.b16 %v293, %v291
    %v344 = vpack.c.b16 %v294, %v292
    %v345 = vpack.c.b16 %v297, %v295
    %v346 = vpack.c.b16 %v298, %v296
    %v347 = vpack.c.b16 %v301, %v299
    %v348 = vpack.c.b16 %v302, %v300
    %v349 = vpack.c.b16 %v305, %v303
    %v350 = vpack.c.b16 %v306, %v304
    %v351 = vpack.c.b16 %v309, %v307
    %v352 = vpack.c.b16 %v310, %v308
    %v353 = vpack.c.b16 %v313, %v311
    %v354 = vpack.c.b16 %v314, %v312
    %v355 = vpack.c.b16 %v317, %v315
    %v356 = vpack.c.b16 %v318, %v316
    %v357 = vpack.c.b16 %v321, %v319
    %v358 = vpack.c.b16 %v322, %v320
    %v359 = vpack.c.b16 %v325, %v323
    %v360 = vpack.c.b16 %v326, %v324
    %v361 = vpack.c.b16 %v329, %v327
    %v362 = vpack.c.b16 %v330, %v328
    %395 = vmatpush.bf16.msra.mxu0 %v345
    %396 = vmatpush.bf16.msra.mxu0 %v343
    %397 = vmatpush.bf16.msra.mxu0 %v341
    %398 = vmatpush.bf16.msra.mxu0 %v339
    %399 = vmatpush.bf16.msra.mxu0 %v337
    %400 = vmatpush.bf16.msra.mxu0 %v335
    %401 = vmatpush.bf16.msra.mxu0 %v333
    %402 = vmatpush.bf16.msra.mxu0 %v331
    %403 = vmatmul.bf16.gmra.mxu0 %v201
    %v404 = vpop.f32.mrf.mxu0
    %v405 = vadd.f32 0.0, %v404
    %v406 = vpop.f32.mrf.mxu0
    %v407 = vadd.f32 0.0, %v406
    %408 = vdwg.mxu0
    %409 = vmatpush.bf16.msra.mxu0 %v361
    %410 = vmatpush.bf16.msra.mxu0 %v359
    %411 = vmatpush.bf16.msra.mxu0 %v357
    %412 = vmatpush.bf16.msra.mxu0 %v355
    %413 = vmatpush.bf16.msra.mxu0 %v353
    %414 = vmatpush.bf16.msra.mxu0 %v351
    %415 = vmatpush.bf16.msra.mxu0 %v349
    %416 = vmatpush.bf16.msra.mxu0 %v347
    %417 = vmatmul.bf16.gmra.mxu0 %v202
    %v418 = vpop.f32.mrf.mxu0
    %v419 = vadd.f32 %v405, %v418
    %v420 = vpop.f32.mrf.mxu0
    %v421 = vadd.f32 %v407, %v420
    %422 = vdwg.mxu0
    %423 = vmatpush.bf16.msra.mxu0 %v346
    %424 = vmatpush.bf16.msra.mxu0 %v344
    %425 = vmatpush.bf16.msra.mxu0 %v342
    %426 = vmatpush.bf16.msra.mxu0 %v340
    %427 = vmatpush.bf16.msra.mxu0 %v338
    %428 = vmatpush.bf16.msra.mxu0 %v336
    %429 = vmatpush.bf16.msra.mxu0 %v334
    %430 = vmatpush.bf16.msra.mxu0 %v332
    %431 = vmatmul.bf16.gmra.mxu0 %v201
    %v432 = vpop.f32.mrf.mxu0
    %v433 = vadd.f32 0.0, %v432
    %v434 = vpop.f32.mrf.mxu0
    %v435 = vadd.f32 0.0, %v434
    %436 = vdwg.mxu0
    %437 = vmatpush.bf16.msra.mxu0 %v362
    %438 = vmatpush.bf16.msra.mxu0 %v360
    %439 = vmatpush.bf16.msra.mxu0 %v358
    %440 = vmatpush.bf16.msra.mxu0 %v356
    %441 = vmatpush.bf16.msra.mxu0 %v354
    %442 = vmatpush.bf16.msra.mxu0 %v352
    %443 = vmatpush.bf16.msra.mxu0 %v350
    %444 = vmatpush.bf16.msra.mxu0 %v348
    %445 = vmatmul.bf16.gmra.mxu0 %v202
    %v446 = vpop.f32.mrf.mxu0
    %v447 = vadd.f32 %v433, %v446
    %v448 = vpop.f32.mrf.mxu0
    %v449 = vadd.f32 %v435, %v448
    %450 = vdwg.mxu0
    %v451 = vpack.c.bf16 %v447, %v419
    %v452 = vpack.c.bf16 %v449, %v421
    %v453 = vld [vmem:[%s4] sm:$0x3]
    %v455 = vperm.slane %v453, 0
    %v456 = vperm.slane %v453, 1
    %v459 = vpack.c.bf16 %v456, %v455
    %v461 = vunpack.c.l.b16 %v459
    %v462 = vunpack.c.h.b16 %v459
    %v463 = vpack.c.b16 %v461, %v461
    %v464 = vpack.c.b16 %v462, %v462
    %v466 = vpack.i.b16 %v463, %v463
    %v468 = vperm.slane %v466, 0
    %v470 = vpack.i.b16 %v464, %v464
    %v472 = vperm.slane %v470, 0
    %v473 = vunpack.c.l.bf16 %v451
    %v474 = vunpack.c.h.bf16 %v451
    %v475 = vunpack.c.l.bf16 %v452
    %v476 = vunpack.c.h.bf16 %v452
    %v477 = vunpack.c.l.bf16 %v468
    %v478 = vunpack.c.l.bf16 %v472
    %v479 = vadd.f32 %v473, %v477
    %v480 = vadd.f32 %v474, %v478
    %v481 = vadd.f32 %v475, %v477
    %v482 = vadd.f32 %v476, %v478
    %v483 = vpack.c.bf16 %v480, %v479
    %v484 = vpack.c.bf16 %v482, %v481
    %v485 = vunpack.c.l.bf16 %v483
    %v486 = vunpack.c.h.bf16 %v483
    %v487 = vunpack.c.l.bf16 %v484
    %v488 = vunpack.c.h.bf16 %v484
    %v489 = vmax.f32 %v485, 0.0
    %v490 = vmax.f32 %v486, 0.0
    %v491 = vmax.f32 %v487, 0.0
    %v492 = vmax.f32 %v488, 0.0
    %v493 = vpack.c.bf16 %v491, %v489
    %v494 = vpack.c.bf16 %v492, %v490
    %v495 = vld [vmem:[#allocation6] sm:$0xf]
    %v496 = vld [vmem:[#allocation6 + $0x4] sm:$0xf]
    %v497 = vld [vmem:[#allocation6 + $0x8] sm:$0xf]
    %v498 = vld [vmem:[#allocation6 + $0xc] sm:$0xf]
    %v499 = vld [vmem:[#allocation6 + $0x10] sm:$0xf]
    %v500 = vld [vmem:[#allocation6 + $0x14] sm:$0xf]
    %v501 = vld [vmem:[#allocation6 + $0x18] sm:$0xf]
    %v502 = vld [vmem:[#allocation6 + $0x1c] sm:$0xf]
    %v503 = vld [vmem:[#allocation6 + $0x20] sm:$0xf]
    %v504 = vld [vmem:[#allocation6 + $0x24] sm:$0xf]
    %v505 = vld [vmem:[#allocation6 + $0x28] sm:$0xf]
    %v506 = vld [vmem:[#allocation6 + $0x2c] sm:$0xf]
    %v507 = vld [vmem:[#allocation6 + $0x30] sm:$0xf]
    %v508 = vld [vmem:[#allocation6 + $0x34] sm:$0xf]
    %v509 = vld [vmem:[#allocation6 + $0x38] sm:$0xf]
    %v510 = vld [vmem:[#allocation6 + $0x3c] sm:$0xf]
    %v511 = vld [vmem:[#allocation6 + $0x40] sm:$0xf]
    %v512 = vld [vmem:[#allocation6 + $0x44] sm:$0xf]
    %v513 = vld [vmem:[#allocation6 + $0x48] sm:$0xf]
    %v514 = vld [vmem:[#allocation6 + $0x4c] sm:$0xf]
    %v515 = vld [vmem:[#allocation6 + $0x50] sm:$0xf]
    %v516 = vld [vmem:[#allocation6 + $0x54] sm:$0xf]
    %v517 = vld [vmem:[#allocation6 + $0x58] sm:$0xf]
    %v518 = vld [vmem:[#allocation6 + $0x5c] sm:$0xf]
    %v519 = vld [vmem:[#allocation6 + $0x60] sm:$0xf]
    %v520 = vld [vmem:[#allocation6 + $0x64] sm:$0xf]
    %v521 = vld [vmem:[#allocation6 + $0x68] sm:$0xf]
    %v522 = vld [vmem:[#allocation6 + $0x6c] sm:$0xf]
    %v523 = vld [vmem:[#allocation6 + $0x70] sm:$0xf]
    %v524 = vld [vmem:[#allocation6 + $0x74] sm:$0xf]
    %v525 = vld [vmem:[#allocation6 + $0x78] sm:$0xf]
    %v526 = vld [vmem:[#allocation6 + $0x7c] sm:$0xf]
    %v559 = vunpack.c.l.b16 %v495
    %v560 = vunpack.c.l.b16 %v496
    %v561 = vunpack.c.l.b16 %v497
    %v562 = vunpack.c.l.b16 %v498
    %v563 = vunpack.c.l.b16 %v499
    %v564 = vunpack.c.l.b16 %v500
    %v565 = vunpack.c.l.b16 %v501
    %v566 = vunpack.c.l.b16 %v502
    %v567 = vunpack.c.l.b16 %v503
    %v568 = vunpack.c.l.b16 %v504
    %v569 = vunpack.c.l.b16 %v505
    %v570 = vunpack.c.l.b16 %v506
    %v571 = vunpack.c.l.b16 %v507
    %v572 = vunpack.c.l.b16 %v508
    %v573 = vunpack.c.l.b16 %v509
    %v574 = vunpack.c.l.b16 %v510
    %v575 = vunpack.c.l.b16 %v511
    %v576 = vunpack.c.l.b16 %v512
    %v577 = vunpack.c.l.b16 %v513
    %v578 = vunpack.c.l.b16 %v514
    %v579 = vunpack.c.l.b16 %v515
    %v580 = vunpack.c.l.b16 %v516
    %v581 = vunpack.c.l.b16 %v517
    %v582 = vunpack.c.l.b16 %v518
    %v583 = vunpack.c.l.b16 %v519
    %v584 = vunpack.c.l.b16 %v520
    %v585 = vunpack.c.l.b16 %v521
    %v586 = vunpack.c.l.b16 %v522
    %v587 = vunpack.c.l.b16 %v523
    %v588 = vunpack.c.l.b16 %v524
    %v589 = vunpack.c.l.b16 %v525
    %v590 = vunpack.c.l.b16 %v526
    %v591 = vpack.c.b16 %v560, %v559
    %v592 = vpack.c.b16 %v562, %v561
    %v593 = vpack.c.b16 %v564, %v563
    %v594 = vpack.c.b16 %v566, %v565
    %v595 = vpack.c.b16 %v568, %v567
    %v596 = vpack.c.b16 %v570, %v569
    %v597 = vpack.c.b16 %v572, %v571
    %v598 = vpack.c.b16 %v574, %v573
    %v599 = vpack.c.b16 %v576, %v575
    %v600 = vpack.c.b16 %v578, %v577
    %v601 = vpack.c.b16 %v580, %v579
    %v602 = vpack.c.b16 %v582, %v581
    %v603 = vpack.c.b16 %v584, %v583
    %v604 = vpack.c.b16 %v586, %v585
    %v605 = vpack.c.b16 %v588, %v587
    %v606 = vpack.c.b16 %v590, %v589
    %623 = vmatpush.bf16.msra.mxu0 %v598
    %624 = vmatpush.bf16.msra.mxu0 %v597
    %625 = vmatpush.bf16.msra.mxu0 %v596
    %626 = vmatpush.bf16.msra.mxu0 %v595
    %627 = vmatpush.bf16.msra.mxu0 %v594
    %628 = vmatpush.bf16.msra.mxu0 %v593
    %629 = vmatpush.bf16.msra.mxu0 %v592
    %630 = vmatpush.bf16.msra.mxu0 %v591
    %631 = vmatmul.bf16.gmra.mxu0 %v493
    %v632 = vpop.f32.mrf.mxu0
    %v633 = vadd.f32 0.0, %v632
    %v634 = vpop.f32.mrf.mxu0
    %v635 = vadd.f32 0.0, %v634
    %636 = vdwg.mxu0
    %637 = vmatpush.bf16.msra.mxu0 %v606
    %638 = vmatpush.bf16.msra.mxu0 %v605
    %639 = vmatpush.bf16.msra.mxu0 %v604
    %640 = vmatpush.bf16.msra.mxu0 %v603
    %641 = vmatpush.bf16.msra.mxu0 %v602
    %642 = vmatpush.bf16.msra.mxu0 %v601
    %643 = vmatpush.bf16.msra.mxu0 %v600
    %644 = vmatpush.bf16.msra.mxu0 %v599
    %645 = vmatmul.bf16.gmra.mxu0 %v494
    %v646 = vpop.f32.mrf.mxu0
    %v647 = vadd.f32 %v633, %v646
    %v648 = vpop.f32.mrf.mxu0
    %v649 = vadd.f32 %v635, %v648
    %650 = vdwg.mxu0
    %v651 = vpack.c.bf16 %v647, %v647
    %v652 = vpack.c.bf16 %v649, %v649
    %v653 = vld [vmem:[%s6] sm:$0x1]
    %v654 = vpack.c.bf16 %v653, %v653
    %v656 = vpack.i.b16 %v654, %v654
    %v658 = vperm.slane %v656, 0
    %v659 = vunpack.c.l.bf16 %v651
    %v660 = vunpack.c.l.bf16 %v652
    %v661 = vunpack.c.l.bf16 %v658
    %v662 = vadd.f32 %v659, %v661
    %v663 = vadd.f32 %v660, %v661
    %v664 = vpack.c.bf16 %v662, %v662
    %v665 = vpack.c.bf16 %v663, %v663
    %v666 = vunpack.c.l.bf16 %v664
    %v667 = vunpack.c.l.bf16 %v665
    %v668 = vmax.f32 %v666, 0.0
    %v669 = vmax.f32 %v667, 0.0
    %v670 = vpack.c.bf16 %v669, %v668
    %v671 = vld [vmem:[#allocation7] sm:$0xf]
    %v672 = vld [vmem:[#allocation7 + $0x4] sm:$0xf]
    %v673 = vld [vmem:[#allocation7 + $0x8] sm:$0xf]
    %v674 = vld [vmem:[#allocation7 + $0xc] sm:$0xf]
    %v675 = vld [vmem:[#allocation7 + $0x10] sm:$0xf]
    %v676 = vld [vmem:[#allocation7 + $0x14] sm:$0xf]
    %v677 = vld [vmem:[#allocation7 + $0x18] sm:$0xf]
    %v678 = vld [vmem:[#allocation7 + $0x1c] sm:$0xf]
    %v679 = vld [vmem:[#allocation7 + $0x20] sm:$0xf]
    %v680 = vld [vmem:[#allocation7 + $0x24] sm:$0xf]
    %v681 = vld [vmem:[#allocation7 + $0x28] sm:$0xf]
    %v682 = vld [vmem:[#allocation7 + $0x2c] sm:$0xf]
    %v683 = vld [vmem:[#allocation7 + $0x30] sm:$0xf]
    %v684 = vld [vmem:[#allocation7 + $0x34] sm:$0xf]
    %v685 = vld [vmem:[#allocation7 + $0x38] sm:$0xf]
    %v686 = vld [vmem:[#allocation7 + $0x3c] sm:$0xf]
    %v687 = vld [vmem:[%s8] sm:$0x1]
    %v689 = vperm.slane %v687, 0
    %v707 = vunpack.c.l.b16 %v671
    %v708 = vunpack.c.l.b16 %v672
    %v709 = vunpack.c.l.b16 %v673
    %v710 = vunpack.c.l.b16 %v674
    %v711 = vunpack.c.l.b16 %v675
    %v712 = vunpack.c.l.b16 %v676
    %v713 = vunpack.c.l.b16 %v677
    %v714 = vunpack.c.l.b16 %v678
    %v715 = vunpack.c.l.b16 %v679
    %v716 = vunpack.c.l.b16 %v680
    %v717 = vunpack.c.l.b16 %v681
    %v718 = vunpack.c.l.b16 %v682
    %v719 = vunpack.c.l.b16 %v683
    %v720 = vunpack.c.l.b16 %v684
    %v721 = vunpack.c.l.b16 %v685
    %v722 = vunpack.c.l.b16 %v686
    %v723 = vpack.c.b16 %v708, %v707
    %v724 = vpack.c.b16 %v710, %v709
    %v725 = vpack.c.b16 %v712, %v711
    %v726 = vpack.c.b16 %v714, %v713
    %v727 = vpack.c.b16 %v716, %v715
    %v728 = vpack.c.b16 %v718, %v717
    %v729 = vpack.c.b16 %v720, %v719
    %v730 = vpack.c.b16 %v722, %v721
    %739 = vmatpush.bf16.msra.mxu0 %v730
    %740 = vmatpush.bf16.msra.mxu0 %v729
    %741 = vmatpush.bf16.msra.mxu0 %v728
    %742 = vmatpush.bf16.msra.mxu0 %v727
    %743 = vmatpush.bf16.msra.mxu0 %v726
    %744 = vmatpush.bf16.msra.mxu0 %v725
    %745 = vmatpush.bf16.msra.mxu0 %v724
    %746 = vmatpush.bf16.msra.mxu0 %v723
    %747 = vmatmul.bf16.gmra.mxu0 %v670
    %v748 = vpop.f32.mrf.mxu0
    %v749 = vadd.f32 %v689, %v748
    %v750 = vpop.f32.mrf.mxu0
    %v751 = vadd.f32 %v689, %v750
    %752 = vdwg.mxu0
    %v753 = vpack.c.bf16 %v749, %v749
    %v754 = vpack.c.bf16 %v751, %v751
    %755 = vst [vmem:[%s9] sm:$0xf] %v753
    %756 = vst [vmem:[%s9 + $0x4] sm:$0xf] %v754
    // Predicated region
    $region54: #{network_forward.1} parent=1 // pred_check
      _
    $region55: #{network_forward.1} parent=1 // pred_check_branch
      %758 = sbr.rel (0) target = $region57
    $region56: #{network_forward.1} parent=1 // pred_region
      _
    $region57: #{network_forward.1} parent=1 // pred_fallthru
      _
    // Predicated region
    $region58: #{network_forward.1} parent=1 // pred_check
      _
    $region59: #{network_forward.1} parent=1 // pred_check_branch
      %760 = sbr.rel (0) target = $region61
    $region60: #{network_forward.1} parent=1 // pred_region
      _
    $region61: #{network_forward.1} parent=1 // pred_fallthru
      _
    %761 = vsyncpa [#allocation3], 1
    %762 = vsyncpa [#allocation5], 1
    %763 = vsyncpa [#allocation8], 1

</llo_original>
